<compile_context>
chip_gen: v7x
topology: tpu7x:2x2x1
jax: 0.10.0
libtpu: 0.0.40
codegen_flags: <defaults>
</compile_context>

<pallas_src>
import numpy as np
import jax
import jax.numpy as jnp
from jax.experimental import pallas as pl
from jax.experimental.pallas import tpu as pltpu


def _nvl_kernel(has_mesh_ref, x_ref, out_ref):
    """has_mesh_ref: (Bp,) int32 in SMEM (scalar prefetch).
    x_ref: (TB, 12, R, 128) block of edge-vector planes.
    out_ref: (1, 1, 128) per-grid-step lane-dense partial sum."""
    TB = x_ref.shape[0]
    b0 = pl.program_id(0) * TB

    def normalize3(x, y, z):
        # F.normalize(p=2, dim=2, eps=1e-12): v / max(||v||, 1e-12)
        n = jnp.sqrt(x * x + y * y + z * z)
        inv = 1.0 / jnp.maximum(n, 1e-12)
        return x * inv, y * inv, z * inv

    def body(tb, acc):
        # --- ground-truth face normal (only nx/ny/nz stay live afterwards) ---
        g1x, g1y, g1z = normalize3(x_ref[tb, 6], x_ref[tb, 7], x_ref[tb, 8])
        g2x, g2y, g2z = normalize3(x_ref[tb, 9], x_ref[tb, 10], x_ref[tb, 11])
        nx = g1y * g2z - g1z * g2y
        ny = g1z * g2x - g1x * g2z
        nz = g1x * g2y - g1y * g2x
        nx, ny, nz = normalize3(nx, ny, nz)

        # --- predicted edges (raw e1/e2 needed to rebuild e3 = e2 - e1) ---
        e1x, e1y, e1z = x_ref[tb, 0], x_ref[tb, 1], x_ref[tb, 2]
        e2x, e2y, e2z = x_ref[tb, 3], x_ref[tb, 4], x_ref[tb, 5]
        e3x, e3y, e3z = e2x - e1x, e2y - e1y, e2z - e1z

        v1x, v1y, v1z = normalize3(e1x, e1y, e1z)
        v2x, v2y, v2z = normalize3(e2x, e2y, e2z)
        v3x, v3y, v3z = normalize3(e3x, e3y, e3z)

        c = (jnp.abs(v1x * nx + v1y * ny + v1z * nz)
             + jnp.abs(v2x * nx + v2y * ny + v2z * nz)
             + jnp.abs(v3x * nx + v3y * ny + v3z * nz))          # (R, 128)

        mask = jnp.where(has_mesh_ref[b0 + tb] == 1,
                         jnp.float32(1.0), jnp.float32(0.0))
        # sublane reduce only; lane + step reduce happen outside the kernel.
        return acc + mask * jnp.sum(c, axis=0, keepdims=True)    # (1, 128)

    acc = jax.lax.fori_loop(0, TB, body, jnp.zeros((1, 128), jnp.float32))
    out_ref[...] = acc.reshape(1, 1, 128)


def normal_vector_loss(pred_vertices, gt_vertices, has_mesh, face):
    """pred_vertices/gt_vertices: [B, V, 3] f32, has_mesh: [B] int, face: [F, 3] int."""
    B = pred_vertices.shape[0]
    F = face.shape[0]

    # Face axis packed densely as (R, 128) with R a multiple of 8 (full vregs).
    R = ((pl.cdiv(F, 128) + 7) // 8) * 8
    Fp = R * 128

    # Batches folded per grid step.  Keep the grid >= 2 whenever B >= 2 (v7x
    # has 2 TCs) and cap the block so a double-buffered input stays far below
    # even v5e's 16 MiB scoped-VMEM default.
    bytes_per_batch_block = 12 * R * 128 * 4
    tb_vmem_cap = max(1, (4 << 20) // bytes_per_batch_block)
    TB = max(1, min(8, pl.cdiv(B, 2), tb_vmem_cap))
    Bp = pl.cdiv(B, TB) * TB
    G = Bp // TB

    f = face.astype(jnp.int32)
    f0, f1, f2 = f[:, 0], f[:, 1], f[:, 2]

    # 12 edge-vector planes, gathered per coordinate (lane-dense (B, F) planes,
    # no minor-dim transposes):
    #   0..2  pred e1 = c1 - c0   (x, y, z)
    #   3..5  pred e2 = c2 - c0
    #   6..8  gt   e1 = c1 - c0
    #   9..11 gt   e2 = c2 - c0
    planes = []
    for verts in (pred_vertices.astype(jnp.float32),
                  gt_vertices.astype(jnp.float32)):
        corners = [[jnp.take(verts[:, :, c], idx, axis=1) for c in range(3)]
                   for idx in (f0, f1, f2)]                      # (B, F) each
        for j in (1, 2):
            for c in range(3):
                planes.append(corners[j][c] - corners[0][c])
    x = jnp.stack(planes, axis=1)                                # (B, 12, F)
    x = jnp.pad(x, ((0, Bp - B), (0, 0), (0, Fp - F)))           # zeros -> 0 loss
    x = x.reshape(Bp, 12, R, 128)

    has_mesh_p = jnp.pad(has_mesh.astype(jnp.int32), (0, Bp - B))  # pad = unselected

    cost = pl.CostEstimate(
        flops=int(80 * Fp * Bp),
        transcendentals=int(6 * Fp * Bp),
        bytes_accessed=int(Bp * 12 * Fp * 4 + G * 128 * 4 + Bp * 4),
    )

    # TODO(synk): for very large meshes add a face-tile grid axis (re-derive the
    # tile budget for v7x's 64 MiB VMEM); for mostly-zero has_mesh, compact the
    # batch axis via a scalar-prefetched index list in the index_map.
    partial = pl.pallas_call(
        _nvl_kernel,
        out_shape=jax.ShapeDtypeStruct((G, 1, 128), jnp.float32),
        grid_spec=pltpu.PrefetchScalarGridSpec(
            num_scalar_prefetch=1,
            grid=(G,),
            in_specs=[pl.BlockSpec((TB, 12, R, 128),
                                   lambda g, hm: (g, 0, 0, 0))],
            out_specs=pl.BlockSpec((1, 1, 128), lambda g, hm: (g, 0, 0)),
        ),
        compiler_params=pltpu.CompilerParams(
            dimension_semantics=("parallel",),      # megacore-splittable (v7x)
            allow_input_fusion=[False, True],       # fuse gather/stack/pad into operand
        ),
        cost_estimate=cost,
    )(has_mesh_p, x)

    loss_sum = jnp.sum(partial)                     # lane + step reduce (tiny)
    n_sel = jnp.sum((has_mesh == 1).astype(jnp.int32))
    denom = (n_sel * 3 * F).astype(jnp.float32)     # divide by F, not Fp
    return jnp.where(n_sel > 0,
                     loss_sum / jnp.maximum(denom, 1.0),
                     jnp.float32(0.0))


def _reference_loss(pred, gt, has_mesh, face):
    """Pure-JAX transcription of the PyTorch forward (eager boolean indexing)."""
    sel = np.asarray(has_mesh) == 1
    co = pred[sel]
    cg = gt[sel]
    if co.shape[0] == 0:
        return jnp.float32(0.0)

    def nrm(v):
        n = jnp.sqrt(jnp.sum(v * v, axis=2, keepdims=True))
        return v / jnp.maximum(n, 1e-12)

    f0, f1, f2 = face[:, 0], face[:, 1], face[:, 2]
    v1o = nrm(co[:, f1] - co[:, f0])
    v2o = nrm(co[:, f2] - co[:, f0])
    v3o = nrm(co[:, f2] - co[:, f1])
    v1g = nrm(cg[:, f1] - cg[:, f0])
    v2g = nrm(cg[:, f2] - cg[:, f0])
    ng = nrm(jnp.cross(v1g, v2g, axis=2))
    cos1 = jnp.abs(jnp.sum(v1o * ng, axis=2, keepdims=True))
    cos2 = jnp.abs(jnp.sum(v2o * ng, axis=2, keepdims=True))
    cos3 = jnp.abs(jnp.sum(v3o * ng, axis=2, keepdims=True))
    return jnp.mean(jnp.concatenate((cos1, cos2, cos3), axis=1))


if __name__ == "__main__":
    key = jax.random.PRNGKey(0)
    k1, k2, k3 = jax.random.split(key, 3)

    B, V, Ff = 4, 16, 20
    pred = jax.random.normal(k1, (B, V, 3), dtype=jnp.float32)
    gt = jax.random.normal(k2, (B, V, 3), dtype=jnp.float32)
    face = jax.random.randint(k3, (Ff, 3), 0, V, dtype=jnp.int32)
    has_mesh = jnp.array([1, 0, 1, 1], dtype=jnp.int32)

    loss = normal_vector_loss(pred, gt, has_mesh, face)
    loss = jax.block_until_ready(loss)

    ref = _reference_loss(pred, gt, has_mesh, face)
    np.testing.assert_allclose(np.asarray(loss), np.asarray(ref),
                               rtol=1e-4, atol=1e-6)

    print("KERNEL_OK")
</pallas_src>

<mosaic_0001>
module attributes {stable_mosaic.version = 11 : i64} {
  func.func @_nvl_kernel(%arg0: i32, %arg1: memref<4xi32, #tpu.memory_space<smem>>, %arg2: memref<2x12x8x128xf32, #tpu.memory_space<vmem>>, %arg3: memref<1x1x128xf32, #tpu.memory_space<vmem>>) attributes {dimension_semantics = [#tpu.dimension_semantics<parallel>], iteration_bounds = array<i64: 2>, scalar_prefetch = 1 : i64, scratch_operands = 0 : i64, tpu.core_type = #tpu.core_type<tc>, window_params = [{transform_indices = @transform_0, window_bounds = array<i64: 2, 12, 8, 128>}, {transform_indices = @transform_1, window_bounds = array<i64: 1, 1, 128>}]} {
    %c2_i32 = arith.constant 2 : i32
    %0 = arith.muli %arg0, %c2_i32 : i32
    %cst = arith.constant 0.000000e+00 : f32
    %1 = vector.broadcast %cst : f32 to vector<1x128xf32>
    %c0_i32 = arith.constant 0 : i32
    %c2_i32_0 = arith.constant 2 : i32
    %2 = arith.addi %c0_i32, %c2_i32_0 : i32
    %c1_i32 = arith.constant 1 : i32
    %3 = scf.for %arg4 = %c0_i32 to %2 step %c1_i32 iter_args(%arg5 = %1) -> (vector<1x128xf32>)  : i32 {
      %6 = arith.index_cast %arg4 : i32 to index
      %c6 = arith.constant 6 : index
      %c0_4 = arith.constant 0 : index
      %c0_5 = arith.constant 0 : index
      %7 = vector.load %arg2[%6, %c6, %c0_4, %c0_5] : memref<2x12x8x128xf32, #tpu.memory_space<vmem>>, vector<1x1x8x128xf32>
      %8 = vector.shape_cast %7 : vector<1x1x8x128xf32> to vector<8x128xf32>
      %9 = arith.index_cast %arg4 : i32 to index
      %c7 = arith.constant 7 : index
      %c0_6 = arith.constant 0 : index
      %c0_7 = arith.constant 0 : index
      %10 = vector.load %arg2[%9, %c7, %c0_6, %c0_7] : memref<2x12x8x128xf32, #tpu.memory_space<vmem>>, vector<1x1x8x128xf32>
      %11 = vector.shape_cast %10 : vector<1x1x8x128xf32> to vector<8x128xf32>
      %12 = arith.index_cast %arg4 : i32 to index
      %c8 = arith.constant 8 : index
      %c0_8 = arith.constant 0 : index
      %c0_9 = arith.constant 0 : index
      %13 = vector.load %arg2[%12, %c8, %c0_8, %c0_9] : memref<2x12x8x128xf32, #tpu.memory_space<vmem>>, vector<1x1x8x128xf32>
      %14 = vector.shape_cast %13 : vector<1x1x8x128xf32> to vector<8x128xf32>
      %15 = arith.mulf %8, %8 : vector<8x128xf32>
      %16 = arith.mulf %11, %11 : vector<8x128xf32>
      %17 = arith.addf %15, %16 : vector<8x128xf32>
      %18 = arith.mulf %14, %14 : vector<8x128xf32>
      %19 = arith.addf %17, %18 : vector<8x128xf32>
      %20 = math.sqrt %19 : vector<8x128xf32>
      %cst_10 = arith.constant 9.99999996E-13 : f32
      %21 = vector.broadcast %cst_10 : f32 to vector<8x128xf32>
      %22 = arith.maximumf %20, %21 : vector<8x128xf32>
      %cst_11 = arith.constant 1.000000e+00 : f32
      %23 = vector.broadcast %cst_11 : f32 to vector<8x128xf32>
      %24 = arith.divf %23, %22 : vector<8x128xf32>
      %25 = arith.mulf %8, %24 : vector<8x128xf32>
      %26 = arith.mulf %11, %24 : vector<8x128xf32>
      %27 = arith.mulf %14, %24 : vector<8x128xf32>
      %28 = arith.index_cast %arg4 : i32 to index
      %c9 = arith.constant 9 : index
      %c0_12 = arith.constant 0 : index
      %c0_13 = arith.constant 0 : index
      %29 = vector.load %arg2[%28, %c9, %c0_12, %c0_13] : memref<2x12x8x128xf32, #tpu.memory_space<vmem>>, vector<1x1x8x128xf32>
      %30 = vector.shape_cast %29 : vector<1x1x8x128xf32> to vector<8x128xf32>
      %31 = arith.index_cast %arg4 : i32 to index
      %c10 = arith.constant 10 : index
      %c0_14 = arith.constant 0 : index
      %c0_15 = arith.constant 0 : index
      %32 = vector.load %arg2[%31, %c10, %c0_14, %c0_15] : memref<2x12x8x128xf32, #tpu.memory_space<vmem>>, vector<1x1x8x128xf32>
      %33 = vector.shape_cast %32 : vector<1x1x8x128xf32> to vector<8x128xf32>
      %34 = arith.index_cast %arg4 : i32 to index
      %c11 = arith.constant 11 : index
      %c0_16 = arith.constant 0 : index
      %c0_17 = arith.constant 0 : index
      %35 = vector.load %arg2[%34, %c11, %c0_16, %c0_17] : memref<2x12x8x128xf32, #tpu.memory_space<vmem>>, vector<1x1x8x128xf32>
      %36 = vector.shape_cast %35 : vector<1x1x8x128xf32> to vector<8x128xf32>
      %37 = arith.mulf %30, %30 : vector<8x128xf32>
      %38 = arith.mulf %33, %33 : vector<8x128xf32>
      %39 = arith.addf %37, %38 : vector<8x128xf32>
      %40 = arith.mulf %36, %36 : vector<8x128xf32>
      %41 = arith.addf %39, %40 : vector<8x128xf32>
      %42 = math.sqrt %41 : vector<8x128xf32>
      %cst_18 = arith.constant 9.99999996E-13 : f32
      %43 = vector.broadcast %cst_18 : f32 to vector<8x128xf32>
      %44 = arith.maximumf %42, %43 : vector<8x128xf32>
      %cst_19 = arith.constant 1.000000e+00 : f32
      %45 = vector.broadcast %cst_19 : f32 to vector<8x128xf32>
      %46 = arith.divf %45, %44 : vector<8x128xf32>
      %47 = arith.mulf %30, %46 : vector<8x128xf32>
      %48 = arith.mulf %33, %46 : vector<8x128xf32>
      %49 = arith.mulf %36, %46 : vector<8x128xf32>
      %50 = arith.mulf %26, %49 : vector<8x128xf32>
      %51 = arith.mulf %27, %48 : vector<8x128xf32>
      %52 = arith.subf %50, %51 : vector<8x128xf32>
      %53 = arith.mulf %27, %47 : vector<8x128xf32>
      %54 = arith.mulf %25, %49 : vector<8x128xf32>
      %55 = arith.subf %53, %54 : vector<8x128xf32>
      %56 = arith.mulf %25, %48 : vector<8x128xf32>
      %57 = arith.mulf %26, %47 : vector<8x128xf32>
      %58 = arith.subf %56, %57 : vector<8x128xf32>
      %59 = arith.mulf %52, %52 : vector<8x128xf32>
      %60 = arith.mulf %55, %55 : vector<8x128xf32>
      %61 = arith.addf %59, %60 : vector<8x128xf32>
      %62 = arith.mulf %58, %58 : vector<8x128xf32>
      %63 = arith.addf %61, %62 : vector<8x128xf32>
      %64 = math.sqrt %63 : vector<8x128xf32>
      %cst_20 = arith.constant 9.99999996E-13 : f32
      %65 = vector.broadcast %cst_20 : f32 to vector<8x128xf32>
      %66 = arith.maximumf %64, %65 : vector<8x128xf32>
      %cst_21 = arith.constant 1.000000e+00 : f32
      %67 = vector.broadcast %cst_21 : f32 to vector<8x128xf32>
      %68 = arith.divf %67, %66 : vector<8x128xf32>
      %69 = arith.mulf %52, %68 : vector<8x128xf32>
      %70 = arith.mulf %55, %68 : vector<8x128xf32>
      %71 = arith.mulf %58, %68 : vector<8x128xf32>
      %72 = arith.index_cast %arg4 : i32 to index
      %c0_22 = arith.constant 0 : index
      %c0_23 = arith.constant 0 : index
      %c0_24 = arith.constant 0 : index
      %73 = vector.load %arg2[%72, %c0_22, %c0_23, %c0_24] : memref<2x12x8x128xf32, #tpu.memory_space<vmem>>, vector<1x1x8x128xf32>
      %74 = vector.shape_cast %73 : vector<1x1x8x128xf32> to vector<8x128xf32>
      %75 = arith.index_cast %arg4 : i32 to index
      %c1 = arith.constant 1 : index
      %c0_25 = arith.constant 0 : index
      %c0_26 = arith.constant 0 : index
      %76 = vector.load %arg2[%75, %c1, %c0_25, %c0_26] : memref<2x12x8x128xf32, #tpu.memory_space<vmem>>, vector<1x1x8x128xf32>
      %77 = vector.shape_cast %76 : vector<1x1x8x128xf32> to vector<8x128xf32>
      %78 = arith.index_cast %arg4 : i32 to index
      %c2 = arith.constant 2 : index
      %c0_27 = arith.constant 0 : index
      %c0_28 = arith.constant 0 : index
      %79 = vector.load %arg2[%78, %c2, %c0_27, %c0_28] : memref<2x12x8x128xf32, #tpu.memory_space<vmem>>, vector<1x1x8x128xf32>
      %80 = vector.shape_cast %79 : vector<1x1x8x128xf32> to vector<8x128xf32>
      %81 = arith.index_cast %arg4 : i32 to index
      %c3 = arith.constant 3 : index
      %c0_29 = arith.constant 0 : index
      %c0_30 = arith.constant 0 : index
      %82 = vector.load %arg2[%81, %c3, %c0_29, %c0_30] : memref<2x12x8x128xf32, #tpu.memory_space<vmem>>, vector<1x1x8x128xf32>
      %83 = vector.shape_cast %82 : vector<1x1x8x128xf32> to vector<8x128xf32>
      %84 = arith.index_cast %arg4 : i32 to index
      %c4 = arith.constant 4 : index
      %c0_31 = arith.constant 0 : index
      %c0_32 = arith.constant 0 : index
      %85 = vector.load %arg2[%84, %c4, %c0_31, %c0_32] : memref<2x12x8x128xf32, #tpu.memory_space<vmem>>, vector<1x1x8x128xf32>
      %86 = vector.shape_cast %85 : vector<1x1x8x128xf32> to vector<8x128xf32>
      %87 = arith.index_cast %arg4 : i32 to index
      %c5 = arith.constant 5 : index
      %c0_33 = arith.constant 0 : index
      %c0_34 = arith.constant 0 : index
      %88 = vector.load %arg2[%87, %c5, %c0_33, %c0_34] : memref<2x12x8x128xf32, #tpu.memory_space<vmem>>, vector<1x1x8x128xf32>
      %89 = vector.shape_cast %88 : vector<1x1x8x128xf32> to vector<8x128xf32>
      %90 = arith.subf %83, %74 : vector<8x128xf32>
      %91 = arith.subf %86, %77 : vector<8x128xf32>
      %92 = arith.subf %89, %80 : vector<8x128xf32>
      %93 = arith.mulf %74, %74 : vector<8x128xf32>
      %94 = arith.mulf %77, %77 : vector<8x128xf32>
      %95 = arith.addf %93, %94 : vector<8x128xf32>
      %96 = arith.mulf %80, %80 : vector<8x128xf32>
      %97 = arith.addf %95, %96 : vector<8x128xf32>
      %98 = math.sqrt %97 : vector<8x128xf32>
      %cst_35 = arith.constant 9.99999996E-13 : f32
      %99 = vector.broadcast %cst_35 : f32 to vector<8x128xf32>
      %100 = arith.maximumf %98, %99 : vector<8x128xf32>
      %cst_36 = arith.constant 1.000000e+00 : f32
      %101 = vector.broadcast %cst_36 : f32 to vector<8x128xf32>
      %102 = arith.divf %101, %100 : vector<8x128xf32>
      %103 = arith.mulf %74, %102 : vector<8x128xf32>
      %104 = arith.mulf %77, %102 : vector<8x128xf32>
      %105 = arith.mulf %80, %102 : vector<8x128xf32>
      %106 = arith.mulf %83, %83 : vector<8x128xf32>
      %107 = arith.mulf %86, %86 : vector<8x128xf32>
      %108 = arith.addf %106, %107 : vector<8x128xf32>
      %109 = arith.mulf %89, %89 : vector<8x128xf32>
      %110 = arith.addf %108, %109 : vector<8x128xf32>
      %111 = math.sqrt %110 : vector<8x128xf32>
      %cst_37 = arith.constant 9.99999996E-13 : f32
      %112 = vector.broadcast %cst_37 : f32 to vector<8x128xf32>
      %113 = arith.maximumf %111, %112 : vector<8x128xf32>
      %cst_38 = arith.constant 1.000000e+00 : f32
      %114 = vector.broadcast %cst_38 : f32 to vector<8x128xf32>
      %115 = arith.divf %114, %113 : vector<8x128xf32>
      %116 = arith.mulf %83, %115 : vector<8x128xf32>
      %117 = arith.mulf %86, %115 : vector<8x128xf32>
      %118 = arith.mulf %89, %115 : vector<8x128xf32>
      %119 = arith.mulf %90, %90 : vector<8x128xf32>
      %120 = arith.mulf %91, %91 : vector<8x128xf32>
      %121 = arith.addf %119, %120 : vector<8x128xf32>
      %122 = arith.mulf %92, %92 : vector<8x128xf32>
      %123 = arith.addf %121, %122 : vector<8x128xf32>
      %124 = math.sqrt %123 : vector<8x128xf32>
      %cst_39 = arith.constant 9.99999996E-13 : f32
      %125 = vector.broadcast %cst_39 : f32 to vector<8x128xf32>
      %126 = arith.maximumf %124, %125 : vector<8x128xf32>
      %cst_40 = arith.constant 1.000000e+00 : f32
      %127 = vector.broadcast %cst_40 : f32 to vector<8x128xf32>
      %128 = arith.divf %127, %126 : vector<8x128xf32>
      %129 = arith.mulf %90, %128 : vector<8x128xf32>
      %130 = arith.mulf %91, %128 : vector<8x128xf32>
      %131 = arith.mulf %92, %128 : vector<8x128xf32>
      %132 = arith.mulf %103, %69 : vector<8x128xf32>
      %133 = arith.mulf %104, %70 : vector<8x128xf32>
      %134 = arith.addf %132, %133 : vector<8x128xf32>
      %135 = arith.mulf %105, %71 : vector<8x128xf32>
      %136 = arith.addf %134, %135 : vector<8x128xf32>
      %137 = math.absf %136 : vector<8x128xf32>
      %138 = arith.mulf %116, %69 : vector<8x128xf32>
      %139 = arith.mulf %117, %70 : vector<8x128xf32>
      %140 = arith.addf %138, %139 : vector<8x128xf32>
      %141 = arith.mulf %118, %71 : vector<8x128xf32>
      %142 = arith.addf %140, %141 : vector<8x128xf32>
      %143 = math.absf %142 : vector<8x128xf32>
      %144 = arith.addf %137, %143 : vector<8x128xf32>
      %145 = arith.mulf %129, %69 : vector<8x128xf32>
      %146 = arith.mulf %130, %70 : vector<8x128xf32>
      %147 = arith.addf %145, %146 : vector<8x128xf32>
      %148 = arith.mulf %131, %71 : vector<8x128xf32>
      %149 = arith.addf %147, %148 : vector<8x128xf32>
      %150 = math.absf %149 : vector<8x128xf32>
      %151 = arith.addf %144, %150 : vector<8x128xf32>
      %152 = arith.addi %0, %arg4 : i32
      %153 = arith.index_cast %152 : i32 to index
      %154 = memref.load %arg1[%153] : memref<4xi32, #tpu.memory_space<smem>>
      %c1_i32_41 = arith.constant 1 : i32
      %155 = arith.cmpi eq, %154, %c1_i32_41 : i32
      %cst_42 = arith.constant 1.000000e+00 : f32
      %cst_43 = arith.constant 0.000000e+00 : f32
      %156 = arith.select %155, %cst_42, %cst_43 : f32
      %cst_44 = arith.constant dense<0.000000e+00> : vector<128xf32>
      %157 = vector.multi_reduction <add>, %151, %cst_44 [0] : vector<8x128xf32> to vector<128xf32>
      %158 = vector.shape_cast %157 : vector<128xf32> to vector<1x128xf32>
      %159 = vector.broadcast %156 : f32 to vector<1x128xf32>
      %160 = arith.mulf %159, %158 : vector<1x128xf32>
      %161 = arith.addf %arg5, %160 : vector<1x128xf32>
      scf.yield %161 : vector<1x128xf32>
    }
    %c2_i32_1 = arith.constant 2 : i32
    %4 = vector.shape_cast %3 : vector<1x128xf32> to vector<1x1x128xf32>
    %c0 = arith.constant 0 : index
    %c0_2 = arith.constant 0 : index
    %c0_3 = arith.constant 0 : index
    %5 = vector.load %arg3[%c0, %c0_2, %c0_3] : memref<1x1x128xf32, #tpu.memory_space<vmem>>, vector<1x1x128xf32>
    tpu.vector_store %arg3[%c0, %c0_2, %c0_3], %4 {strides = array<i32>} : memref<1x1x128xf32, #tpu.memory_space<vmem>>, vector<1x1x128xf32>,
    return
  }
  func.func @transform_0(%arg0: i32, %arg1: memref<4xi32, #tpu.memory_space<smem>>) -> (i32, i32, i32, i32) {
    %c0_i32 = arith.constant 0 : i32
    %c0_i32_0 = arith.constant 0 : i32
    %c0_i32_1 = arith.constant 0 : i32
    %c0_i32_2 = arith.constant 0 : i32
    return %arg0, %c0_i32, %c0_i32_0, %c0_i32_1 : i32, i32, i32, i32
  }
  func.func @transform_1(%arg0: i32, %arg1: memref<4xi32, #tpu.memory_space<smem>>) -> (i32, i32, i32) {
    %c0_i32 = arith.constant 0 : i32
    %c0_i32_0 = arith.constant 0 : i32
    %c0_i32_1 = arith.constant 0 : i32
    return %arg0, %c0_i32, %c0_i32_0 : i32, i32, i32
  }
}

</mosaic_0001>

<llo_original>
// kernel: tpu_custom_call.1
$region0: #{tpu_custom_call.1}
  #allocation0 [shape = 'u32[]', space=smem, size = 0x4, offset = 0x4, fixed_abs, tag = 'smem constant byte address 0x4 - core index']
  #allocation1 [shape = 'u32[144,128]{1,0:T(1,128)}', space=vmem, size = 0x12000, scoped, tag = 'internal scratch']
  #allocation2 [shape = 's32[1]{0}', space=sflag, size = 0x4, scoped, tag = 'scoped memory for tpu_custom_call.1']
  #allocation3 [shape = 'u8[512]{0}', space=smem, size = 0x200, scoped, tag = 'prefetched SMEM operand 0']
  %s0 = inlined_call_operand.hbm [shape: s32[4], index: 0, kind: input, shape index: {}]
  %s1 = inlined_call_operand.hbm [shape: f32[4,12,8,128], index: 1, kind: input, shape index: {}]
  %s2 = inlined_call_operand.hbm [shape: f32[2,1,128], index: 2, kind: output, shape index: {}]
  %s3 = sld [smem:[#allocation0]]
  $region48: #{tpu_custom_call.1} parent=0
    _
  %s5 = ssub.s32 1, %s3
  %s6 = scalar_select 0, %s5, %s3
  %8 = dma.hbm_to_smem %s0, 16, [#allocation3], [#allocation2]
  %9 = dma.done [#allocation2], 16
  %10 = sfence
  $region1: #{tpu_custom_call.1} parent=0
    #allocation4 [shape = 'u8[196608]{0}', space=vmem, size = 0x30000, scoped, tag = 'input window, operand 1']
    #allocation5 [shape = 's32[2]{0}', space=sflag, size = 0x8, scoped, tag = 'scoped memory for tpu_custom_call.1']
    #allocation6 [shape = 's32[2]{0}', space=sflag, size = 0x8, scoped, tag = 'scoped memory for tpu_custom_call.1']
    #allocation7 [shape = 'u8[1024]{0}', space=vmem, size = 0x400, scoped, tag = 'output window, operand 0']
    %11 = vsyncpa [#allocation5], 0
    %s12 = scalar_lea.sflag [#allocation5], 1
    %13 = vsyncpa %s12, 0
    %14 = vsyncpa [#allocation6], 0
    %s15 = scalar_lea.sflag [#allocation6], 1
    %16 = vsyncpa %s15, 0
    loop: start=0, step=1, limit=4
    $region2: #{tpu_custom_call.1} parent=1 // loop_pre_header
      _
    $region3: #{tpu_custom_call.1} parent=1 // loop_header
      %s18 = sphi 0, %s22
      %p19 = scmp.ge.s32.totalorder %s18, 4
      %s28 = sphi 0, %s30
      %s31 = sphi 0, %s28
      %s32 = sphi 0, %s31
      %s48 = sphi 0, %s32
      %s54 = sphi 0, %s56
      %s57 = sphi 0, %s54
      %s58 = sphi 0, %s57
      %s74 = sphi 0, %s58
    $region4: #{tpu_custom_call.1} parent=1 // loop_header_branch
      %21 = sbr.rel (%p19) target = $region8
    $region5: #{tpu_custom_call.1} parent=1 // loop_body
      %s23 = ssub.s32 %s18, 1
      %s24 = ssub.s32 %s18, 2
      %s25 = sadd.s32 %s18, 1
      %s26 = ssub.s32 %s18, %s25
      %p27 = scmp.eq.s32.totalorder %s26, 0
      %s29 = sadd.s32 %s28, 1
      %s30 = scalar_select %p27, %s28, %s29
      %p33 = pneg %p27
      %p34 = scmp.eq.s32.totalorder %s18, 1
      %p35 = por %p33, %p34
      %p36 = scmp.ne.s32.totalorder %s28, %s31
      %p37 = scmp.eq.s32.totalorder %s18, 0
      %p38 = por %p36, %p37
      %p39 = scmp.ne.s32.totalorder %s28, %s31
      %p40 = scmp.eq.s32.totalorder %s23, 1
      %p41 = por %p39, %p40
      %p42 = scmp.ne.s32.totalorder %s31, %s32
      %p43 = scmp.eq.s32.totalorder %s23, 0
      %p44 = por %p42, %p43
      %p45 = scmp.ne.s32.totalorder %s31, %s32
      %p46 = scmp.eq.s32.totalorder %s24, 1
      %p47 = por %p45, %p46
      %p49 = scmp.ne.s32.totalorder %s32, %s48
      %p50 = scmp.eq.s32.totalorder %s24, 0
      %p51 = por %p49, %p50
      %s52 = ssub.s32 %s18, %s25
      %p53 = scmp.eq.s32.totalorder %s52, 0
      %s55 = sadd.s32 %s54, 1
      %s56 = scalar_select %p53, %s54, %s55
      %p59 = pneg %p53
      %p60 = scmp.eq.s32.totalorder %s18, 1
      %p61 = por %p59, %p60
      %p62 = scmp.ne.s32.totalorder %s54, %s57
      %p63 = scmp.eq.s32.totalorder %s18, 0
      %p64 = por %p62, %p63
      %p65 = scmp.ne.s32.totalorder %s54, %s57
      %p66 = scmp.eq.s32.totalorder %s23, 1
      %p67 = por %p65, %p66
      %p68 = scmp.ne.s32.totalorder %s57, %s58
      %p69 = scmp.eq.s32.totalorder %s23, 0
      %p70 = por %p68, %p69
      %p71 = scmp.ne.s32.totalorder %s57, %s58
      %p72 = scmp.eq.s32.totalorder %s24, 1
      %p73 = por %p71, %p72
      %p75 = scmp.ne.s32.totalorder %s58, %s74
      %p76 = scmp.eq.s32.totalorder %s24, 0
      %p77 = por %p75, %p76
      %p78 = scmp.le.s32.totalorder 1, %s18
      %p79 = scmp.lt.s32.totalorder %s18, 3
      %p80 = pnand %p78, %p79
      %p81 = pneg %p80
      // Predicated region
      $region9: #{tpu_custom_call.1} parent=5 // pred_check
        _
      $region10: #{tpu_custom_call.1} parent=5 // pred_check_branch
        %83 = sbr.rel (%p80) target = $region12
      $region11: #{tpu_custom_call.1} parent=5 // pred_region
        %s84 = ssub.s32 %s18, 1
      $region12: #{tpu_custom_call.1} parent=5 // pred_fallthru
        _
      %p85 = scmp.lt.s32.totalorder %s18, 2
      // Predicated region
      $region13: #{tpu_custom_call.1} parent=5 // pred_check
        %p86 = pneg %p85
      $region14: #{tpu_custom_call.1} parent=5 // pred_check_branch
        %88 = sbr.rel (%p86) target = $region16
      $region15: #{tpu_custom_call.1} parent=5 // pred_region
        // Predicated region
        $region17: #{tpu_custom_call.1} parent=15 // pred_check
          %p89 = pneg %p38
        $region18: #{tpu_custom_call.1} parent=15 // pred_check_branch
          %91 = sbr.rel (%p89) target = $region20
        $region19: #{tpu_custom_call.1} parent=15 // pred_region
          %s92 = sand.u32 %s28, 1
          %s93 = scalar_lea.sflag [#allocation5], %s92
          %s94 = sand.u32 %s28, 1
          %s95 = smul.addr %s94, 192
          %s96 = scalar_lea.vmem [#allocation4], %s95
          %s97 = smul.u32 2, %s18
          %s99 = ssub.s32 3072, 3072
          %100 = vsyncadd %s93, %s99
          %s101 = smul.addr %s97, 12
          %s102 = smul.addr %s101, 128
          %s103 = scalar_lea.hbm %s1, %s102
          %s104 = sshll.u32 %s96, 4
          %s105 = int_to_ptr.vmem [resolvable:$true] %s104
          %110 = dma.hbm_to_vmem [thread:$0]  %s103, 3072, %s105, %s93, 128, 128, 8
        $region20: #{tpu_custom_call.1} parent=15 // pred_fallthru
          _
      $region16: #{tpu_custom_call.1} parent=5 // pred_fallthru
        _
      %p111 = scmp.le.s32.totalorder 1, %s18
      %p112 = scmp.lt.s32.totalorder %s18, 3
      %p113 = pnand %p111, %p112
      %p114 = pneg %p113
      // Predicated region
      $region21: #{tpu_custom_call.1} parent=5 // pred_check
        _
      $region22: #{tpu_custom_call.1} parent=5 // pred_check_branch
        %116 = sbr.rel (%p113) target = $region24
      $region23: #{tpu_custom_call.1} parent=5 // pred_region
        %s117 = ssub.s32 %s18, 1
        %s118 = sand.u32 %s31, 1
        %s119 = scalar_lea.sflag [#allocation5], %s118
        %s120 = sand.u32 %s31, 1
        %s121 = smul.addr %s120, 192
        %s122 = scalar_lea.vmem [#allocation4], %s121
        // Predicated region
        $region25: #{tpu_custom_call.1} parent=23 // pred_check
          %p123 = pneg %p44
        $region26: #{tpu_custom_call.1} parent=23 // pred_check_branch
          %125 = sbr.rel (%p123) target = $region28
        $region27: #{tpu_custom_call.1} parent=23 // pred_region
          %126 = dma.done %s119, 3072
        $region28: #{tpu_custom_call.1} parent=23 // pred_fallthru
          _
        %s127 = sand.u32 %s31, 1
        %s128 = scalar_lea.sflag [#allocation5], %s127
        %s129 = sand.u32 %s31, 1
        %s130 = smul.addr %s129, 192
        %s131 = scalar_lea.vmem [#allocation4], %s130
        %p132 = pneg %p44
        %p133 = pneg %p41
        %p134 = pneg %p70
        %p135 = pneg %p67
        %s136 = sand.u32 %s57, 1
        %s137 = scalar_lea.sflag [#allocation6], %s136
        %s138 = sand.u32 %s57, 1
        %s139 = scalar_lea.vmem [#allocation7], %s138
        %s140 = smul.u32 2, %s23
        %s141 = smul.u32 %s23, 2
        loop: start=0, step=1, limit=2
        $region29: #{tpu_custom_call.1} parent=23 // loop_pre_header
          _
        $region30: #{tpu_custom_call.1} parent=23 // loop_header
          %s143 = sphi 0, %s147
          %p144 = scmp.ge.s32.totalorder %s143, 2
          %v148 = vphi 0.0, %v337
        $region31: #{tpu_custom_call.1} parent=23 // loop_header_branch
          %146 = sbr.rel (%p144) target = $region35
        $region32: #{tpu_custom_call.1} parent=23 // loop_body
          %s149 = smul.u32 %s143, 96
          %s150 = sadd.s32 48, %s149
          %s151 = scalar_lea.vmem %s122, %s150 [#allocation4]
          %v152 = vld [vmem:[%s151] sm:$0xff]
          %s153 = sadd.s32 56, %s149
          %s154 = scalar_lea.vmem %s122, %s153 [#allocation4]
          %v155 = vld [vmem:[%s154] sm:$0xff]
          %s156 = sadd.s32 64, %s149
          %s157 = scalar_lea.vmem %s122, %s156 [#allocation4]
          %v158 = vld [vmem:[%s157] sm:$0xff]
          %v159 = vmul.f32 %v152, %v152
          %v160 = vmul.f32 %v155, %v155
          %v161 = vadd.f32 %v159, %v160
          %v162 = vmul.f32 %v158, %v158
          %v163 = vadd.f32 %v161, %v162
          %v164 = vrsqrt.pop %v163
          %v165 = vmul.f32 %v163, %v164
          %vm166 = vcmp.eq.f32.partialorder %v163, inf
          %v167 = vsel %vm166, %v163, %v165
          %vm168 = vcmp.eq.f32.partialorder %v163, 0.0
          %v169 = vand.u32 %v163, 2147483648
          %v170 = vsel %vm168, %v169, %v167
          %v171 = vmax.f32 %v170, 1e-12
          %v172 = vrcp.pop %v171
          %v173 = vmul.f32 1.0, %v172
          %v174 = vmul.f32 %v152, %v173
          %v175 = vmul.f32 %v155, %v173
          %v176 = vmul.f32 %v158, %v173
          %s177 = sadd.s32 72, %s149
          %s178 = scalar_lea.vmem %s122, %s177 [#allocation4]
          %v179 = vld [vmem:[%s178] sm:$0xff]
          %s180 = sadd.s32 80, %s149
          %s181 = scalar_lea.vmem %s122, %s180 [#allocation4]
          %v182 = vld [vmem:[%s181] sm:$0xff]
          %s183 = sadd.s32 88, %s149
          %s184 = scalar_lea.vmem %s122, %s183 [#allocation4]
          %v185 = vld [vmem:[%s184] sm:$0xff]
          %v186 = vmul.f32 %v179, %v179
          %v187 = vmul.f32 %v182, %v182
          %v188 = vadd.f32 %v186, %v187
          %v189 = vmul.f32 %v185, %v185
          %v190 = vadd.f32 %v188, %v189
          %v191 = vrsqrt.pop %v190
          %v192 = vmul.f32 %v190, %v191
          %vm193 = vcmp.eq.f32.partialorder %v190, inf
          %v194 = vsel %vm193, %v190, %v192
          %vm195 = vcmp.eq.f32.partialorder %v190, 0.0
          %v196 = vand.u32 %v190, 2147483648
          %v197 = vsel %vm195, %v196, %v194
          %v198 = vmax.f32 %v197, 1e-12
          %v199 = vrcp.pop %v198
          %v200 = vmul.f32 1.0, %v199
          %v201 = vmul.f32 %v179, %v200
          %v202 = vmul.f32 %v182, %v200
          %v203 = vmul.f32 %v185, %v200
          %v204 = vmul.f32 %v175, %v203
          %v205 = vmul.f32 %v176, %v202
          %v206 = vsub.f32 %v204, %v205
          %v207 = vmul.f32 %v176, %v201
          %v208 = vmul.f32 %v174, %v203
          %v209 = vsub.f32 %v207, %v208
          %v210 = vmul.f32 %v174, %v202
          %v211 = vmul.f32 %v175, %v201
          %v212 = vsub.f32 %v210, %v211
          %v213 = vmul.f32 %v206, %v206
          %v214 = vmul.f32 %v209, %v209
          %v215 = vadd.f32 %v213, %v214
          %v216 = vmul.f32 %v212, %v212
          %v217 = vadd.f32 %v215, %v216
          %v218 = vrsqrt.pop %v217
          %v219 = vmul.f32 %v217, %v218
          %vm220 = vcmp.eq.f32.partialorder %v217, inf
          %v221 = vsel %vm220, %v217, %v219
          %vm222 = vcmp.eq.f32.partialorder %v217, 0.0
          %v223 = vand.u32 %v217, 2147483648
          %v224 = vsel %vm222, %v223, %v221
          %v225 = vmax.f32 %v224, 1e-12
          %v226 = vrcp.pop %v225
          %v227 = vmul.f32 1.0, %v226
          %v228 = vmul.f32 %v206, %v227
          %v229 = vmul.f32 %v209, %v227
          %v230 = vmul.f32 %v212, %v227
          %s231 = scalar_lea.vmem %s122, %s149 [#allocation4]
          %v232 = vld [vmem:[%s231] sm:$0xff]
          %s233 = sadd.s32 8, %s149
          %s234 = scalar_lea.vmem %s122, %s233 [#allocation4]
          %v235 = vld [vmem:[%s234] sm:$0xff]
          %s236 = sadd.s32 16, %s149
          %s237 = scalar_lea.vmem %s122, %s236 [#allocation4]
          %v238 = vld [vmem:[%s237] sm:$0xff]
          %s239 = sadd.s32 24, %s149
          %s240 = scalar_lea.vmem %s122, %s239 [#allocation4]
          %v241 = vld [vmem:[%s240] sm:$0xff]
          %s242 = sadd.s32 32, %s149
          %s243 = scalar_lea.vmem %s122, %s242 [#allocation4]
          %v244 = vld [vmem:[%s243] sm:$0xff]
          %s245 = sadd.s32 40, %s149
          %s246 = scalar_lea.vmem %s122, %s245 [#allocation4]
          %v247 = vld [vmem:[%s246] sm:$0xff]
          %v248 = vsub.f32 %v241, %v232
          %v249 = vsub.f32 %v244, %v235
          %v250 = vsub.f32 %v247, %v238
          %v251 = vmul.f32 %v232, %v232
          %v252 = vmul.f32 %v235, %v235
          %v253 = vadd.f32 %v251, %v252
          %v254 = vmul.f32 %v238, %v238
          %v255 = vadd.f32 %v253, %v254
          %v256 = vrsqrt.pop %v255
          %v257 = vmul.f32 %v255, %v256
          %vm258 = vcmp.eq.f32.partialorder %v255, inf
          %v259 = vsel %vm258, %v255, %v257
          %vm260 = vcmp.eq.f32.partialorder %v255, 0.0
          %v261 = vand.u32 %v255, 2147483648
          %v262 = vsel %vm260, %v261, %v259
          %v263 = vmax.f32 %v262, 1e-12
          %v264 = vrcp.pop %v263
          %v265 = vmul.f32 1.0, %v264
          %v266 = vmul.f32 %v232, %v265
          %v267 = vmul.f32 %v235, %v265
          %v268 = vmul.f32 %v238, %v265
          %v269 = vmul.f32 %v241, %v241
          %v270 = vmul.f32 %v244, %v244
          %v271 = vadd.f32 %v269, %v270
          %v272 = vmul.f32 %v247, %v247
          %v273 = vadd.f32 %v271, %v272
          %v274 = vrsqrt.pop %v273
          %v275 = vmul.f32 %v273, %v274
          %vm276 = vcmp.eq.f32.partialorder %v273, inf
          %v277 = vsel %vm276, %v273, %v275
          %vm278 = vcmp.eq.f32.partialorder %v273, 0.0
          %v279 = vand.u32 %v273, 2147483648
          %v280 = vsel %vm278, %v279, %v277
          %v281 = vmax.f32 %v280, 1e-12
          %v282 = vrcp.pop %v281
          %v283 = vmul.f32 1.0, %v282
          %v284 = vmul.f32 %v241, %v283
          %v285 = vmul.f32 %v244, %v283
          %v286 = vmul.f32 %v247, %v283
          %v287 = vmul.f32 %v248, %v248
          %v288 = vmul.f32 %v249, %v249
          %v289 = vadd.f32 %v287, %v288
          %v290 = vmul.f32 %v250, %v250
          %v291 = vadd.f32 %v289, %v290
          %v292 = vrsqrt.pop %v291
          %v293 = vmul.f32 %v291, %v292
          %vm294 = vcmp.eq.f32.partialorder %v291, inf
          %v295 = vsel %vm294, %v291, %v293
          %vm296 = vcmp.eq.f32.partialorder %v291, 0.0
          %v297 = vand.u32 %v291, 2147483648
          %v298 = vsel %vm296, %v297, %v295
          %v299 = vmax.f32 %v298, 1e-12
          %v300 = vrcp.pop %v299
          %v301 = vmul.f32 1.0, %v300
          %v302 = vmul.f32 %v248, %v301
          %v303 = vmul.f32 %v249, %v301
          %v304 = vmul.f32 %v250, %v301
          %v305 = vmul.f32 %v266, %v228
          %v306 = vmul.f32 %v267, %v229
          %v307 = vadd.f32 %v305, %v306
          %v308 = vmul.f32 %v268, %v230
          %v309 = vadd.f32 %v307, %v308
          %v310 = vand.u32 2147483647, %v309
          %v311 = vmul.f32 %v284, %v228
          %v312 = vmul.f32 %v285, %v229
          %v313 = vadd.f32 %v311, %v312
          %v314 = vmul.f32 %v286, %v230
          %v315 = vadd.f32 %v313, %v314
          %v316 = vand.u32 2147483647, %v315
          %v317 = vadd.f32 %v310, %v316
          %v318 = vmul.f32 %v302, %v228
          %v319 = vmul.f32 %v303, %v229
          %v320 = vadd.f32 %v318, %v319
          %v321 = vmul.f32 %v304, %v230
          %v322 = vadd.f32 %v320, %v321
          %v323 = vand.u32 2147483647, %v322
          %v324 = vadd.f32 %v317, %v323
          %s325 = sadd.s32 %s141, %s143
          %s326 = sld [smem:[#allocation3 + %s325]]
          %p327 = scmp.eq.s32.totalorder %s326, 1
          %s328 = scalar_select %p327, 1.0, 0.0
          %v329 = vrot.slane %v324, 4
          %v330 = vadd.f32 %v324, %v329
          %v331 = vrot.slane %v330, 2
          %v332 = vadd.f32 %v330, %v331
          %v333 = vrot.slane %v332, 1
          %v334 = vadd.f32 %v332, %v333
          %v335 = vstv %s328
          %v336 = vmul.f32 %v335, %v334
          %v337 = vadd.f32 %v148, %v336
        $region33: #{tpu_custom_call.1} parent=23 // loop_footer
          %s147 = sadd.s32 1, %s143
        $region34: #{tpu_custom_call.1} parent=23 // loop_footer_branch
          %142 = sbr.rel target = $region30
        $region35: #{tpu_custom_call.1} parent=23 // loop_exit
          _
        %338 = vst [vmem:[%s139] sm:$0x1] %v148
        %s339 = sand.u32 %s57, 1
        %s340 = scalar_lea.sflag [#allocation6], %s339
        %s341 = sand.u32 %s57, 1
        %s342 = scalar_lea.vmem [#allocation7], %s341
        // Predicated region
        $region36: #{tpu_custom_call.1} parent=23 // pred_check
          %p343 = pneg %p67
        $region37: #{tpu_custom_call.1} parent=23 // pred_check_branch
          %345 = sbr.rel (%p343) target = $region39
        $region38: #{tpu_custom_call.1} parent=23 // pred_region
          %s347 = ssub.s32 16, 16
          %348 = vsyncadd %s340, %s347
          %s349 = smul.addr %s23, 16
          %s350 = scalar_lea.hbm %s2, %s349
          %s352 = sshll.u32 %s342, 4
          %s353 = int_to_ptr.vmem [resolvable:$true] %s352
          %355 = dma.vmem_to_hbm [thread:$0]  %s353, 16, %s350, %s340
        $region39: #{tpu_custom_call.1} parent=23 // pred_fallthru
          _
      $region24: #{tpu_custom_call.1} parent=5 // pred_fallthru
        _
      %p356 = scmp.le.s32.totalorder 2, %s18
      // Predicated region
      $region40: #{tpu_custom_call.1} parent=5 // pred_check
        %p357 = pneg %p356
      $region41: #{tpu_custom_call.1} parent=5 // pred_check_branch
        %359 = sbr.rel (%p357) target = $region43
      $region42: #{tpu_custom_call.1} parent=5 // pred_region
        %s360 = ssub.s32 %s18, 2
        // Predicated region
        $region44: #{tpu_custom_call.1} parent=42 // pred_check
          %p361 = pneg %p73
        $region45: #{tpu_custom_call.1} parent=42 // pred_check_branch
          %363 = sbr.rel (%p361) target = $region47
        $region46: #{tpu_custom_call.1} parent=42 // pred_region
          %s364 = sand.u32 %s58, 1
          %s365 = scalar_lea.sflag [#allocation6], %s364
          %s366 = sand.u32 %s58, 1
          %s367 = scalar_lea.vmem [#allocation7], %s366
          %368 = dma.done %s365, 16
        $region47: #{tpu_custom_call.1} parent=42 // pred_fallthru
          _
      $region43: #{tpu_custom_call.1} parent=5 // pred_fallthru
        _
    $region6: #{tpu_custom_call.1} parent=1 // loop_footer
      %s22 = sadd.s32 1, %s18
    $region7: #{tpu_custom_call.1} parent=1 // loop_footer_branch
      %17 = sbr.rel target = $region3
    $region8: #{tpu_custom_call.1} parent=1 // loop_exit
      _
    %369 = vsyncpa [#allocation5], 1
    %s370 = scalar_lea.sflag [#allocation5], 1
    %371 = vsyncpa %s370, 1
    %372 = vsyncpa [#allocation6], 1
    %s373 = scalar_lea.sflag [#allocation6], 1
    %374 = vsyncpa %s373, 1

</llo_original>
